<compile_context>
chip_gen: v7x
topology: tpu7x:2x2x1
jax: 0.10.0
libtpu: 0.0.40
codegen_flags: <defaults>
</compile_context>

<pallas_src>
import jax
import jax.numpy as jnp
from jax.experimental import pallas as pl
from jax.experimental.pallas import tpu as pltpu  # noqa: F401 (kept for parity)

_BN_EPS = 1e-5
_LANE = 128


def _round_up(n, m=_LANE):
    return ((n + m - 1) // m) * m


def _make_mlp_kernel(num_layers, n_rows, in_channel, c_pad, out_channel, eps):
    """Fused [matmul -> batch-stats -> normalize -> ReLU] x L, single invocation."""
    inv_n = 1.0 / float(n_rows)

    def kernel(x_ref, w_ref, gb_ref, o_ref):
        act = x_ref[...]                               # (N, Cin) f32, lives in vregs
        gb = gb_ref[...]                               # (2L, C_pad) loaded ONCE
        ones_row = jnp.ones((1, n_rows), jnp.float32)  # MXU reduction vector (hoisted)

        cin = in_channel
        for i in range(num_layers):
            # Layer weight: (cin, C_pad). Layer 0 slices to the true in_channel.
            w = w_ref[i, :cin, :]

            # Linear (bias dropped: exact no-op under BN mean subtraction).
            z = jnp.dot(act, w, preferred_element_type=jnp.float32)

            # BatchNorm1d training mode: two-pass batch mean / biased variance.
            # Both reductions use the MXU (idle after the layer matmul).
            mean = jnp.dot(ones_row, z, preferred_element_type=jnp.float32) * inv_n
            centered = z - mean
            var = jnp.dot(ones_row, centered * centered,
                          preferred_element_type=jnp.float32) * inv_n

            # Fold gamma into inverse std, then affine + ReLU.
            scale = gb[2 * i:2 * i + 1, :] * jax.lax.rsqrt(var + eps)
            act = jnp.maximum(centered * scale + gb[2 * i + 1:2 * i + 2, :], 0.0)
            cin = c_pad

        # In-kernel slice to the true output width (no wrapper-side slice HLO).
        o_ref[...] = act[:, :out_channel]

    return kernel


def init_pc_loc_decoder_params(key, in_channel, mlp):
    """Raw parameters mirroring the PyTorch module (Linear + BatchNorm1d)."""
    params = []
    last = in_channel
    for out_channel in mlp:
        key, kw, kb = jax.random.split(key, 3)
        bound = 1.0 / (last ** 0.5)  # PyTorch Linear default U(-1/sqrt(fan_in), ...)
        w = jax.random.uniform(kw, (out_channel, last), jnp.float32, -bound, bound)
        b = jax.random.uniform(kb, (out_channel,), jnp.float32, -bound, bound)
        gamma = jnp.ones((out_channel,), jnp.float32)   # BatchNorm1d weight
        beta = jnp.zeros((out_channel,), jnp.float32)   # BatchNorm1d bias
        params.append((w, b, gamma, beta))
        last = out_channel
    return params


def prepare_params(params, in_channel):
    """One-time pack: transpose + pad every weight to (C_pad, C_pad) and stack
    into one slab; stack gamma/beta rows into a second slab.

    Linear biases are intentionally dropped (exact no-op under training-mode BN).
    Padded rows/cols (and padded gamma/beta) are zero, so padded features stay
    exactly 0.0 through every layer.
    Returns (w_stack (L, C_pad, C_pad), gb_stack (2L, C_pad), c_pad).
    """
    couts = [w.shape[0] for (w, _b, _g, _bt) in params]
    c_pad = _round_up(max([in_channel] + couts))

    w_slabs, gb_rows = [], []
    last = in_channel
    for (w, _b, gamma, beta) in params:
        cout = w.shape[0]
        w_t = jnp.zeros((c_pad, c_pad), jnp.float32)
        w_t = w_t.at[:last, :cout].set(jnp.transpose(w).astype(jnp.float32))
        w_slabs.append(w_t)
        gb_rows.append(jnp.zeros((c_pad,), jnp.float32).at[:cout].set(gamma))
        gb_rows.append(jnp.zeros((c_pad,), jnp.float32).at[:cout].set(beta))
        last = cout

    return jnp.stack(w_slabs), jnp.stack(gb_rows), c_pad


def pc_loc_decoder_forward(x, packed, in_channel, out_channel):
    """Full forward pass as ONE gridless fused Pallas kernel -> (N, out_channel)."""
    w_stack, gb_stack, c_pad = packed
    N = x.shape[0]
    num_layers = w_stack.shape[0]

    flops = 0
    for i in range(num_layers):
        cin = in_channel if i == 0 else c_pad
        flops += 2 * N * cin * c_pad        # layer matmul
        flops += 2 * (2 * N * c_pad)        # two MXU stat reductions
        flops += 6 * N * c_pad              # center / scale / shift / relu (VPU)
    bytes_accessed = (x.size + w_stack.size + gb_stack.size + N * out_channel) * 4

    # No grid, no BlockSpecs: whole arrays land in VMEM for a single invocation
    # (3 input DMAs total: x, packed weights, packed gamma/beta).
    return pl.pallas_call(
        _make_mlp_kernel(num_layers, N, in_channel, c_pad, out_channel, _BN_EPS),
        out_shape=jax.ShapeDtypeStruct((N, out_channel), jnp.float32),
        cost_estimate=pl.CostEstimate(
            flops=flops,
            transcendentals=num_layers * c_pad,   # one rsqrt per feature per layer
            bytes_accessed=bytes_accessed,
        ),
    )(x, w_stack, gb_stack)


def _reference_forward(x, params):
    """Pure-JAX reference with PyTorch training-mode semantics (incl. bias)."""
    for (w, b, gamma, beta) in params:
        y = x @ w.T + b
        mean = jnp.mean(y, axis=0, keepdims=True)
        var = jnp.mean((y - mean) ** 2, axis=0, keepdims=True)  # biased
        y = (y - mean) * jax.lax.rsqrt(var + _BN_EPS) * gamma + beta
        x = jnp.maximum(y, 0.0)
    return x


if __name__ == "__main__":
    key = jax.random.PRNGKey(0)
    key, kx = jax.random.split(key)

    batch = 8
    in_channel = 32
    mlp = (64, 32)

    x = jax.random.normal(kx, (batch, in_channel), dtype=jnp.float32)
    params = init_pc_loc_decoder_params(key, in_channel, mlp)
    packed = prepare_params(params, in_channel)   # hoisted: transpose + pad + pack once

    out = pc_loc_decoder_forward(x, packed, in_channel, mlp[-1])
    jax.block_until_ready(out)

    assert out.shape == (batch, mlp[-1])
    assert out.dtype == jnp.float32

    ref = _reference_forward(x, params)
    assert jnp.allclose(out, ref, atol=1e-4, rtol=1e-4), "mismatch vs reference"

    # TODO(synk): BatchNorm1d running_mean/running_var updates (training-mode side
    # state) are not materialized; they do not affect this forward's output.
    print("KERNEL_OK")
</pallas_src>

<mosaic_0001>
module attributes {stable_mosaic.version = 11 : i64} {
  func.func @kernel(%arg0: memref<8x32xf32, #tpu.memory_space<vmem>>, %arg1: memref<2x128x128xf32, #tpu.memory_space<vmem>>, %arg2: memref<4x128xf32, #tpu.memory_space<vmem>>, %arg3: memref<8x32xf32, #tpu.memory_space<vmem>>) attributes {dimension_semantics = [], scalar_prefetch = 0 : i64, scratch_operands = 0 : i64, tpu.core_type = #tpu.core_type<tc>} {
    %c0 = arith.constant 0 : index
    %c0_0 = arith.constant 0 : index
    %0 = vector.load %arg0[%c0, %c0_0] : memref<8x32xf32, #tpu.memory_space<vmem>>, vector<8x32xf32>
    %c0_1 = arith.constant 0 : index
    %c0_2 = arith.constant 0 : index
    %1 = vector.load %arg2[%c0_1, %c0_2] : memref<4x128xf32, #tpu.memory_space<vmem>>, vector<4x128xf32>
    %cst = arith.constant 1.000000e+00 : f32
    %2 = vector.broadcast %cst : f32 to vector<1x8xf32>
    %c0_3 = arith.constant 0 : index
    %c0_4 = arith.constant 0 : index
    %c0_5 = arith.constant 0 : index
    %3 = vector.load %arg1[%c0_3, %c0_4, %c0_5] : memref<2x128x128xf32, #tpu.memory_space<vmem>>, vector<1x32x128xf32>
    %4 = vector.shape_cast %3 : vector<1x32x128xf32> to vector<32x128xf32>
    %cst_6 = arith.constant dense<0.000000e+00> : vector<8x128xf32>
    %5 = tpu.matmul %0, %4, %cst_6 {dimension_numbers = #tpu.dot_dimension_numbers<[1], [0], [0], [1], [0, 0, 1, 1], [], []>} : vector<8x32xf32>, vector<32x128xf32>, vector<8x128xf32> -> vector<8x128xf32>
    %cst_7 = arith.constant dense<0.000000e+00> : vector<1x128xf32>
    %6 = tpu.matmul %2, %5, %cst_7 {dimension_numbers = #tpu.dot_dimension_numbers<[1], [0], [0], [1], [0, 0, 1, 1], [], []>} : vector<1x8xf32>, vector<8x128xf32>, vector<1x128xf32> -> vector<1x128xf32>
    %cst_8 = arith.constant 1.250000e-01 : f32
    %7 = vector.broadcast %cst_8 : f32 to vector<1x128xf32>
    %8 = arith.mulf %6, %7 : vector<1x128xf32>
    %9 = vector.broadcast %8 : vector<1x128xf32> to vector<8x128xf32>
    %10 = arith.subf %5, %9 : vector<8x128xf32>
    %11 = arith.mulf %10, %10 : vector<8x128xf32>
    %cst_9 = arith.constant dense<0.000000e+00> : vector<1x128xf32>
    %12 = tpu.matmul %2, %11, %cst_9 {dimension_numbers = #tpu.dot_dimension_numbers<[1], [0], [0], [1], [0, 0, 1, 1], [], []>} : vector<1x8xf32>, vector<8x128xf32>, vector<1x128xf32> -> vector<1x128xf32>
    %cst_10 = arith.constant 1.250000e-01 : f32
    %13 = vector.broadcast %cst_10 : f32 to vector<1x128xf32>
    %14 = arith.mulf %12, %13 : vector<1x128xf32>
    %15 = vector.extract_strided_slice %1 {offsets = [0, 0], sizes = [1, 128], strides = [1, 1]} : vector<4x128xf32> to vector<1x128xf32>
    %cst_11 = arith.constant 9.99999974E-6 : f32
    %16 = vector.broadcast %cst_11 : f32 to vector<1x128xf32>
    %17 = arith.addf %14, %16 : vector<1x128xf32>
    %18 = math.rsqrt %17 : vector<1x128xf32>
    %19 = arith.mulf %15, %18 : vector<1x128xf32>
    %20 = vector.broadcast %19 : vector<1x128xf32> to vector<8x128xf32>
    %21 = arith.mulf %10, %20 : vector<8x128xf32>
    %22 = vector.extract_strided_slice %1 {offsets = [1, 0], sizes = [1, 128], strides = [1, 1]} : vector<4x128xf32> to vector<1x128xf32>
    %23 = vector.broadcast %22 : vector<1x128xf32> to vector<8x128xf32>
    %24 = arith.addf %21, %23 : vector<8x128xf32>
    %cst_12 = arith.constant 0.000000e+00 : f32
    %25 = vector.broadcast %cst_12 : f32 to vector<8x128xf32>
    %26 = arith.maximumf %24, %25 : vector<8x128xf32>
    %c1 = arith.constant 1 : index
    %c0_13 = arith.constant 0 : index
    %c0_14 = arith.constant 0 : index
    %27 = vector.load %arg1[%c1, %c0_13, %c0_14] : memref<2x128x128xf32, #tpu.memory_space<vmem>>, vector<1x128x128xf32>
    %28 = vector.shape_cast %27 : vector<1x128x128xf32> to vector<128x128xf32>
    %cst_15 = arith.constant dense<0.000000e+00> : vector<8x128xf32>
    %29 = tpu.matmul %26, %28, %cst_15 {dimension_numbers = #tpu.dot_dimension_numbers<[1], [0], [0], [1], [0, 0, 1, 1], [], []>} : vector<8x128xf32>, vector<128x128xf32>, vector<8x128xf32> -> vector<8x128xf32>
    %cst_16 = arith.constant dense<0.000000e+00> : vector<1x128xf32>
    %30 = tpu.matmul %2, %29, %cst_16 {dimension_numbers = #tpu.dot_dimension_numbers<[1], [0], [0], [1], [0, 0, 1, 1], [], []>} : vector<1x8xf32>, vector<8x128xf32>, vector<1x128xf32> -> vector<1x128xf32>
    %cst_17 = arith.constant 1.250000e-01 : f32
    %31 = vector.broadcast %cst_17 : f32 to vector<1x128xf32>
    %32 = arith.mulf %30, %31 : vector<1x128xf32>
    %33 = vector.broadcast %32 : vector<1x128xf32> to vector<8x128xf32>
    %34 = arith.subf %29, %33 : vector<8x128xf32>
    %35 = arith.mulf %34, %34 : vector<8x128xf32>
    %cst_18 = arith.constant dense<0.000000e+00> : vector<1x128xf32>
    %36 = tpu.matmul %2, %35, %cst_18 {dimension_numbers = #tpu.dot_dimension_numbers<[1], [0], [0], [1], [0, 0, 1, 1], [], []>} : vector<1x8xf32>, vector<8x128xf32>, vector<1x128xf32> -> vector<1x128xf32>
    %cst_19 = arith.constant 1.250000e-01 : f32
    %37 = vector.broadcast %cst_19 : f32 to vector<1x128xf32>
    %38 = arith.mulf %36, %37 : vector<1x128xf32>
    %39 = vector.extract_strided_slice %1 {offsets = [2, 0], sizes = [1, 128], strides = [1, 1]} : vector<4x128xf32> to vector<1x128xf32>
    %cst_20 = arith.constant 9.99999974E-6 : f32
    %40 = vector.broadcast %cst_20 : f32 to vector<1x128xf32>
    %41 = arith.addf %38, %40 : vector<1x128xf32>
    %42 = math.rsqrt %41 : vector<1x128xf32>
    %43 = arith.mulf %39, %42 : vector<1x128xf32>
    %44 = vector.broadcast %43 : vector<1x128xf32> to vector<8x128xf32>
    %45 = arith.mulf %34, %44 : vector<8x128xf32>
    %46 = vector.extract_strided_slice %1 {offsets = [3, 0], sizes = [1, 128], strides = [1, 1]} : vector<4x128xf32> to vector<1x128xf32>
    %47 = vector.broadcast %46 : vector<1x128xf32> to vector<8x128xf32>
    %48 = arith.addf %45, %47 : vector<8x128xf32>
    %cst_21 = arith.constant 0.000000e+00 : f32
    %49 = vector.broadcast %cst_21 : f32 to vector<8x128xf32>
    %50 = arith.maximumf %48, %49 : vector<8x128xf32>
    %51 = vector.extract_strided_slice %50 {offsets = [0, 0], sizes = [8, 32], strides = [1, 1]} : vector<8x128xf32> to vector<8x32xf32>
    %c0_22 = arith.constant 0 : index
    %c0_23 = arith.constant 0 : index
    %52 = vector.load %arg3[%c0_22, %c0_23] : memref<8x32xf32, #tpu.memory_space<vmem>>, vector<8x32xf32>
    tpu.vector_store %arg3[%c0_22, %c0_23], %51 {strides = array<i32>} : memref<8x32xf32, #tpu.memory_space<vmem>>, vector<8x32xf32>,
    return
  }
}

</mosaic_0001>

<llo_original>
// kernel: tpu_custom_call.1
$region0: #{tpu_custom_call.1}
  #allocation0 [shape = 'u32[]', space=smem, size = 0x4, offset = 0x4, fixed_abs, tag = 'smem constant byte address 0x4 - core index']
  #allocation1 [shape = 'u32[144,128]{1,0:T(1,128)}', space=vmem, size = 0x12000, scoped, tag = 'internal scratch']
  %s0 = inlined_call_operand.hbm [shape: f32[8,32], index: 0, kind: input, shape index: {}]
  %s1 = inlined_call_operand.hbm [shape: f32[2,128,128], index: 1, kind: input, shape index: {}]
  %s2 = inlined_call_operand.vmem [shape: f32[4,128], index: 2, kind: input, shape index: {}]
  %s3 = inlined_call_operand.hbm [shape: f32[8,32], index: 3, kind: output, shape index: {}]
  %s4 = sld [smem:[#allocation0]]
  $region30: #{tpu_custom_call.1} parent=0
    _
  %s6 = ssub.s32 1, %s4
  %s7 = scalar_select 0, %s6, %s4
  $region1: #{tpu_custom_call.1} parent=0
    #allocation2 [shape = 'u8[4096]{0}', space=vmem, size = 0x1000, scoped, tag = 'input window, operand 0, single buffered']
    #allocation3 [shape = 's32[1]{0}', space=sflag, size = 0x4, scoped, tag = 'scoped memory for tpu_custom_call.1']
    #allocation4 [shape = 's32[1]{0}', space=sflag, size = 0x4, scoped, tag = 'scoped memory for tpu_custom_call.1']
    #allocation5 [shape = 'u8[131072]{0}', space=vmem, size = 0x20000, scoped, tag = 'input window, operand 1, single buffered']
    #allocation6 [shape = 's32[1]{0}', space=sflag, size = 0x4, scoped, tag = 'scoped memory for tpu_custom_call.1']
    #allocation7 [shape = 'u8[4096]{0}', space=vmem, size = 0x1000, scoped, tag = 'output window, operand 0, single buffered']
    %8 = vsyncpa [#allocation3], 0
    %9 = vsyncpa [#allocation6], 0
    %10 = vsyncpa [#allocation4], 0
    // Predicated region
    $region2: #{tpu_custom_call.1} parent=1 // pred_check
      _
    $region3: #{tpu_custom_call.1} parent=1 // pred_check_branch
      %12 = sbr.rel (0) target = $region5
    $region4: #{tpu_custom_call.1} parent=1 // pred_region
      %s14 = ssub.s32 128, 128
      %15 = vsyncadd [#allocation3], %s14
      %s17 = sshll.u32 [#allocation2], 4
      %s18 = int_to_ptr.vmem [resolvable:$true] %s17
      %20 = dma.hbm_to_vmem [thread:$0]  %s0, 128, %s18, [#allocation3]
    $region5: #{tpu_custom_call.1} parent=1 // pred_fallthru
      _
    // Predicated region
    $region6: #{tpu_custom_call.1} parent=1 // pred_check
      _
    $region7: #{tpu_custom_call.1} parent=1 // pred_check_branch
      %22 = sbr.rel (0) target = $region9
    $region8: #{tpu_custom_call.1} parent=1 // pred_region
      %s24 = ssub.s32 4096, 4096
      %25 = vsyncadd [#allocation6], %s24
      %s26 = sshll.u32 [#allocation5], 4
      %s27 = int_to_ptr.vmem [resolvable:$true] %s26
      %32 = dma.hbm_to_vmem [thread:$0]  %s1, 4096, %s27, [#allocation6], 128, 128, 8
    $region9: #{tpu_custom_call.1} parent=1 // pred_fallthru
      _
    // Predicated region
    $region10: #{tpu_custom_call.1} parent=1 // pred_check
      _
    $region11: #{tpu_custom_call.1} parent=1 // pred_check_branch
      %34 = sbr.rel (0) target = $region13
    $region12: #{tpu_custom_call.1} parent=1 // pred_region
      _
    $region13: #{tpu_custom_call.1} parent=1 // pred_fallthru
      _
    // Predicated region
    $region14: #{tpu_custom_call.1} parent=1 // pred_check
      _
    $region15: #{tpu_custom_call.1} parent=1 // pred_check_branch
      %36 = sbr.rel (0) target = $region17
    $region16: #{tpu_custom_call.1} parent=1 // pred_region
      %37 = dma.done [#allocation3], 128
    $region17: #{tpu_custom_call.1} parent=1 // pred_fallthru
      _
    // Predicated region
    $region18: #{tpu_custom_call.1} parent=1 // pred_check
      _
    $region19: #{tpu_custom_call.1} parent=1 // pred_check_branch
      %39 = sbr.rel (0) target = $region21
    $region20: #{tpu_custom_call.1} parent=1 // pred_region
      %40 = dma.done [#allocation6], 4096
    $region21: #{tpu_custom_call.1} parent=1 // pred_fallthru
      _
    %v41 = vld [vmem:[#allocation2] sm:$0xff]
    %v42 = vld [vmem:[%s2] sm:$0xf]
    %v43 = vld [vmem:[#allocation5] sm:$0xff]
    %v44 = vld [vmem:[#allocation5 + $0x8] sm:$0xff]
    %v45 = vld [vmem:[#allocation5 + $0x10] sm:$0xff]
    %v46 = vld [vmem:[#allocation5 + $0x18] sm:$0xff]
    %vm47 = vcmask 261120
    %v49 = vsel %vm47, %v41, 0
    %51 = vmatprep.subr.mxu0 0.0
    %52 = vmatpush1.msra.mxu0 %v43
    %53 = vmatprep.subr.mxu0 0.0
    %54 = vmatpush1.msra.mxu0 %v44
    %55 = vmatprep.subr.mxu0 0.0
    %56 = vmatpush1.msra.mxu0 %v45
    %57 = vmatprep.subr.mxu0 0.0
    %58 = vmatpush1.msra.mxu0 %v46
    %59 = vmatprep.subr.mxu0 0.0
    %60 = vmatpush1.msra.mxu0 0.0
    %61 = vmatprep.subr.mxu0 0.0
    %62 = vmatpush1.msra.mxu0 0.0
    %63 = vmatprep.subr.mxu0 0.0
    %64 = vmatpush1.msra.mxu0 0.0
    %65 = vmatprep.subr.mxu0 0.0
    %66 = vmatpush1.msra.mxu0 0.0
    %67 = vmatprep.subr.mxu0 0.0
    %68 = vmatpush1.msra.mxu0 0.0
    %69 = vmatprep.subr.mxu0 0.0
    %70 = vmatpush1.msra.mxu0 0.0
    %71 = vmatprep.subr.mxu0 0.0
    %72 = vmatpush1.msra.mxu0 0.0
    %73 = vmatprep.subr.mxu0 0.0
    %74 = vmatpush1.msra.mxu0 0.0
    %75 = vmatprep.subr.mxu0 0.0
    %76 = vmatpush1.msra.mxu0 0.0
    %77 = vmatprep.subr.mxu0 0.0
    %78 = vmatpush1.msra.mxu0 0.0
    %79 = vmatprep.subr.mxu0 0.0
    %80 = vmatpush1.msra.mxu0 0.0
    %81 = vmatprep.subr.mxu0 0.0
    %82 = vmatpush1.msra.mxu0 0.0
    %83 = vmatprep.subr.mxu0 0.0
    %84 = vmatpush1.msra.mxu0 0.0
    %85 = vmatprep.subr.mxu0 0.0
    %86 = vmatpush1.msra.mxu0 0.0
    %87 = vmatprep.subr.mxu0 0.0
    %88 = vmatpush1.msra.mxu0 0.0
    %89 = vmatprep.subr.mxu0 0.0
    %90 = vmatpush1.msra.mxu0 0.0
    %91 = vmatprep.subr.mxu0 0.0
    %92 = vmatpush1.msra.mxu0 0.0
    %93 = vmatprep.subr.mxu0 0.0
    %94 = vmatpush1.msra.mxu0 0.0
    %95 = vmatprep.subr.mxu0 0.0
    %96 = vmatpush1.msra.mxu0 0.0
    %97 = vmatprep.subr.mxu0 0.0
    %98 = vmatpush1.msra.mxu0 0.0
    %99 = vmatprep.subr.mxu0 0.0
    %100 = vmatpush1.msra.mxu0 0.0
    %101 = vmatprep.subr.mxu0 0.0
    %102 = vmatpush1.msra.mxu0 0.0
    %103 = vmatprep.subr.mxu0 0.0
    %104 = vmatpush1.msra.mxu0 0.0
    %105 = vmatprep.subr.mxu0 0.0
    %106 = vmatpush1.msra.mxu0 0.0
    %107 = vmatprep.subr.mxu0 0.0
    %108 = vmatpush1.msra.mxu0 0.0
    %109 = vmatprep.subr.mxu0 0.0
    %110 = vmatpush1.msra.mxu0 0.0
    %111 = vmatprep.subr.mxu0 0.0
    %112 = vmatpush1.msra.mxu0 0.0
    %113 = vmatprep.subr.mxu0 0.0
    %114 = vmatpush1.msra.mxu0 0.0
    %115 = vmatprep.mubr.f32.mxu0 0.0
    %116 = vmatmul.mubr.f32.gmra.mrb[0].mxu0 %v49
    %v117 = vpop.f32.mrb[0].mxu0
    %v118 = vadd.f32 0.0, %v117
    %v119 = vpop.f32.mrb[0].mxu0
    %120 = vdwg.mxu0
    %vm121 = vcmask 64512
    %v123 = vsel %vm121, 1.0, 0
    %125 = vmatprep.subr.mxu0 0.0
    %126 = vmatpush1.msra.mxu0 %v118
    %127 = vmatprep.subr.mxu0 0.0
    %128 = vmatpush1.msra.mxu0 0.0
    %129 = vmatprep.subr.mxu0 0.0
    %130 = vmatpush1.msra.mxu0 0.0
    %131 = vmatprep.subr.mxu0 0.0
    %132 = vmatpush1.msra.mxu0 0.0
    %133 = vmatprep.subr.mxu0 0.0
    %134 = vmatpush1.msra.mxu0 0.0
    %135 = vmatprep.subr.mxu0 0.0
    %136 = vmatpush1.msra.mxu0 0.0
    %137 = vmatprep.subr.mxu0 0.0
    %138 = vmatpush1.msra.mxu0 0.0
    %139 = vmatprep.subr.mxu0 0.0
    %140 = vmatpush1.msra.mxu0 0.0
    %141 = vmatprep.subr.mxu0 0.0
    %142 = vmatpush1.msra.mxu0 0.0
    %143 = vmatprep.subr.mxu0 0.0
    %144 = vmatpush1.msra.mxu0 0.0
    %145 = vmatprep.subr.mxu0 0.0
    %146 = vmatpush1.msra.mxu0 0.0
    %147 = vmatprep.subr.mxu0 0.0
    %148 = vmatpush1.msra.mxu0 0.0
    %149 = vmatprep.subr.mxu0 0.0
    %150 = vmatpush1.msra.mxu0 0.0
    %151 = vmatprep.subr.mxu0 0.0
    %152 = vmatpush1.msra.mxu0 0.0
    %153 = vmatprep.subr.mxu0 0.0
    %154 = vmatpush1.msra.mxu0 0.0
    %155 = vmatprep.subr.mxu0 0.0
    %156 = vmatpush1.msra.mxu0 0.0
    %157 = vmatprep.subr.mxu0 0.0
    %158 = vmatpush1.msra.mxu0 0.0
    %159 = vmatprep.subr.mxu0 0.0
    %160 = vmatpush1.msra.mxu0 0.0
    %161 = vmatprep.subr.mxu0 0.0
    %162 = vmatpush1.msra.mxu0 0.0
    %163 = vmatprep.subr.mxu0 0.0
    %164 = vmatpush1.msra.mxu0 0.0
    %165 = vmatprep.subr.mxu0 0.0
    %166 = vmatpush1.msra.mxu0 0.0
    %167 = vmatprep.subr.mxu0 0.0
    %168 = vmatpush1.msra.mxu0 0.0
    %169 = vmatprep.subr.mxu0 0.0
    %170 = vmatpush1.msra.mxu0 0.0
    %171 = vmatprep.subr.mxu0 0.0
    %172 = vmatpush1.msra.mxu0 0.0
    %173 = vmatprep.subr.mxu0 0.0
    %174 = vmatpush1.msra.mxu0 0.0
    %175 = vmatprep.subr.mxu0 0.0
    %176 = vmatpush1.msra.mxu0 0.0
    %177 = vmatprep.subr.mxu0 0.0
    %178 = vmatpush1.msra.mxu0 0.0
    %179 = vmatprep.subr.mxu0 0.0
    %180 = vmatpush1.msra.mxu0 0.0
    %181 = vmatprep.subr.mxu0 0.0
    %182 = vmatpush1.msra.mxu0 0.0
    %183 = vmatprep.subr.mxu0 0.0
    %184 = vmatpush1.msra.mxu0 0.0
    %185 = vmatprep.subr.mxu0 0.0
    %186 = vmatpush1.msra.mxu0 0.0
    %187 = vmatprep.subr.mxu0 0.0
    %188 = vmatpush1.msra.mxu0 0.0
    %189 = vmatprep.mubr.f32.mxu0 0.0
    %190 = vmatmul.mubr.f32.gmra.mrb[0].mxu0 %v123
    %v191 = vpop.f32.mrb[0].mxu0
    %v192 = vadd.f32 0.0, %v191
    %v193 = vpop.f32.mrb[0].mxu0
    %194 = vdwg.mxu0
    %v195 = vmul.f32 %v192, 0.125
    %v196 = vlaneseq
    %v197 = vshrl.u32 %v196, 7
    %v198 = vsub.s32 0, %v197
    %v199 = vrot.slane %v195, %v198
    %v200 = vsub.f32 %v118, %v199
    %v201 = vmul.f32 %v200, %v200
    %202 = vmatprep.subr.mxu0 0.0
    %203 = vmatpush1.msra.mxu0 %v201
    %204 = vmatprep.subr.mxu0 0.0
    %205 = vmatpush1.msra.mxu0 0.0
    %206 = vmatprep.subr.mxu0 0.0
    %207 = vmatpush1.msra.mxu0 0.0
    %208 = vmatprep.subr.mxu0 0.0
    %209 = vmatpush1.msra.mxu0 0.0
    %210 = vmatprep.subr.mxu0 0.0
    %211 = vmatpush1.msra.mxu0 0.0
    %212 = vmatprep.subr.mxu0 0.0
    %213 = vmatpush1.msra.mxu0 0.0
    %214 = vmatprep.subr.mxu0 0.0
    %215 = vmatpush1.msra.mxu0 0.0
    %216 = vmatprep.subr.mxu0 0.0
    %217 = vmatpush1.msra.mxu0 0.0
    %218 = vmatprep.subr.mxu0 0.0
    %219 = vmatpush1.msra.mxu0 0.0
    %220 = vmatprep.subr.mxu0 0.0
    %221 = vmatpush1.msra.mxu0 0.0
    %222 = vmatprep.subr.mxu0 0.0
    %223 = vmatpush1.msra.mxu0 0.0
    %224 = vmatprep.subr.mxu0 0.0
    %225 = vmatpush1.msra.mxu0 0.0
    %226 = vmatprep.subr.mxu0 0.0
    %227 = vmatpush1.msra.mxu0 0.0
    %228 = vmatprep.subr.mxu0 0.0
    %229 = vmatpush1.msra.mxu0 0.0
    %230 = vmatprep.subr.mxu0 0.0
    %231 = vmatpush1.msra.mxu0 0.0
    %232 = vmatprep.subr.mxu0 0.0
    %233 = vmatpush1.msra.mxu0 0.0
    %234 = vmatprep.subr.mxu0 0.0
    %235 = vmatpush1.msra.mxu0 0.0
    %236 = vmatprep.subr.mxu0 0.0
    %237 = vmatpush1.msra.mxu0 0.0
    %238 = vmatprep.subr.mxu0 0.0
    %239 = vmatpush1.msra.mxu0 0.0
    %240 = vmatprep.subr.mxu0 0.0
    %241 = vmatpush1.msra.mxu0 0.0
    %242 = vmatprep.subr.mxu0 0.0
    %243 = vmatpush1.msra.mxu0 0.0
    %244 = vmatprep.subr.mxu0 0.0
    %245 = vmatpush1.msra.mxu0 0.0
    %246 = vmatprep.subr.mxu0 0.0
    %247 = vmatpush1.msra.mxu0 0.0
    %248 = vmatprep.subr.mxu0 0.0
    %249 = vmatpush1.msra.mxu0 0.0
    %250 = vmatprep.subr.mxu0 0.0
    %251 = vmatpush1.msra.mxu0 0.0
    %252 = vmatprep.subr.mxu0 0.0
    %253 = vmatpush1.msra.mxu0 0.0
    %254 = vmatprep.subr.mxu0 0.0
    %255 = vmatpush1.msra.mxu0 0.0
    %256 = vmatprep.subr.mxu0 0.0
    %257 = vmatpush1.msra.mxu0 0.0
    %258 = vmatprep.subr.mxu0 0.0
    %259 = vmatpush1.msra.mxu0 0.0
    %260 = vmatprep.subr.mxu0 0.0
    %261 = vmatpush1.msra.mxu0 0.0
    %262 = vmatprep.subr.mxu0 0.0
    %263 = vmatpush1.msra.mxu0 0.0
    %264 = vmatprep.subr.mxu0 0.0
    %265 = vmatpush1.msra.mxu0 0.0
    %266 = vmatprep.mubr.f32.mxu0 0.0
    %267 = vmatmul.mubr.f32.gmra.mrb[0].mxu0 %v123
    %v268 = vpop.f32.mrb[0].mxu0
    %v269 = vadd.f32 0.0, %v268
    %v270 = vpop.f32.mrb[0].mxu0
    %271 = vdwg.mxu0
    %v272 = vmul.f32 %v269, 0.125
    %v273 = vadd.f32 %v272, 1e-05
    %v274 = vrsqrt.pop %v273
    %v275 = vmul.f32 %v42, %v274
    %v276 = vlaneseq
    %v277 = vshrl.u32 %v276, 7
    %v278 = vsub.s32 0, %v277
    %v279 = vrot.slane %v275, %v278
    %v280 = vmul.f32 %v200, %v279
    %v281 = vlaneseq
    %v282 = vshrl.u32 %v281, 7
    %v283 = vsub.s32 1, %v282
    %v284 = vrot.slane %v42, %v283
    %v285 = vadd.f32 %v280, %v284
    %v286 = vmax.f32 %v285, 0.0
    %s287 = scalar_lea.vmem [#allocation5], 128
    %v288 = vld [vmem:[%s287] sm:$0xff]
    %v289 = vld [vmem:[%s287 + $0x8] sm:$0xff]
    %v290 = vld [vmem:[%s287 + $0x10] sm:$0xff]
    %v291 = vld [vmem:[%s287 + $0x18] sm:$0xff]
    %v292 = vld [vmem:[%s287 + $0x20] sm:$0xff]
    %v293 = vld [vmem:[%s287 + $0x28] sm:$0xff]
    %v294 = vld [vmem:[%s287 + $0x30] sm:$0xff]
    %v295 = vld [vmem:[%s287 + $0x38] sm:$0xff]
    %v296 = vld [vmem:[%s287 + $0x40] sm:$0xff]
    %v297 = vld [vmem:[%s287 + $0x48] sm:$0xff]
    %v298 = vld [vmem:[%s287 + $0x50] sm:$0xff]
    %v299 = vld [vmem:[%s287 + $0x58] sm:$0xff]
    %v300 = vld [vmem:[%s287 + $0x60] sm:$0xff]
    %v301 = vld [vmem:[%s287 + $0x68] sm:$0xff]
    %v302 = vld [vmem:[%s287 + $0x70] sm:$0xff]
    %v303 = vld [vmem:[%s287 + $0x78] sm:$0xff]
    %304 = vmatprep.subr.mxu0 0.0
    %305 = vmatpush1.msra.mxu0 %v288
    %306 = vmatprep.subr.mxu0 0.0
    %307 = vmatpush1.msra.mxu0 %v289
    %308 = vmatprep.subr.mxu0 0.0
    %309 = vmatpush1.msra.mxu0 %v290
    %310 = vmatprep.subr.mxu0 0.0
    %311 = vmatpush1.msra.mxu0 %v291
    %312 = vmatprep.subr.mxu0 0.0
    %313 = vmatpush1.msra.mxu0 %v292
    %314 = vmatprep.subr.mxu0 0.0
    %315 = vmatpush1.msra.mxu0 %v293
    %316 = vmatprep.subr.mxu0 0.0
    %317 = vmatpush1.msra.mxu0 %v294
    %318 = vmatprep.subr.mxu0 0.0
    %319 = vmatpush1.msra.mxu0 %v295
    %320 = vmatprep.subr.mxu0 0.0
    %321 = vmatpush1.msra.mxu0 %v296
    %322 = vmatprep.subr.mxu0 0.0
    %323 = vmatpush1.msra.mxu0 %v297
    %324 = vmatprep.subr.mxu0 0.0
    %325 = vmatpush1.msra.mxu0 %v298
    %326 = vmatprep.subr.mxu0 0.0
    %327 = vmatpush1.msra.mxu0 %v299
    %328 = vmatprep.subr.mxu0 0.0
    %329 = vmatpush1.msra.mxu0 %v300
    %330 = vmatprep.subr.mxu0 0.0
    %331 = vmatpush1.msra.mxu0 %v301
    %332 = vmatprep.subr.mxu0 0.0
    %333 = vmatpush1.msra.mxu0 %v302
    %334 = vmatprep.subr.mxu0 0.0
    %335 = vmatpush1.msra.mxu0 %v303
    %336 = vmatprep.subr.mxu0 0.0
    %337 = vmatpush1.msra.mxu0 0.0
    %338 = vmatprep.subr.mxu0 0.0
    %339 = vmatpush1.msra.mxu0 0.0
    %340 = vmatprep.subr.mxu0 0.0
    %341 = vmatpush1.msra.mxu0 0.0
    %342 = vmatprep.subr.mxu0 0.0
    %343 = vmatpush1.msra.mxu0 0.0
    %344 = vmatprep.subr.mxu0 0.0
    %345 = vmatpush1.msra.mxu0 0.0
    %346 = vmatprep.subr.mxu0 0.0
    %347 = vmatpush1.msra.mxu0 0.0
    %348 = vmatprep.subr.mxu0 0.0
    %349 = vmatpush1.msra.mxu0 0.0
    %350 = vmatprep.subr.mxu0 0.0
    %351 = vmatpush1.msra.mxu0 0.0
    %352 = vmatprep.subr.mxu0 0.0
    %353 = vmatpush1.msra.mxu0 0.0
    %354 = vmatprep.subr.mxu0 0.0
    %355 = vmatpush1.msra.mxu0 0.0
    %356 = vmatprep.subr.mxu0 0.0
    %357 = vmatpush1.msra.mxu0 0.0
    %358 = vmatprep.subr.mxu0 0.0
    %359 = vmatpush1.msra.mxu0 0.0
    %360 = vmatprep.subr.mxu0 0.0
    %361 = vmatpush1.msra.mxu0 0.0
    %362 = vmatprep.subr.mxu0 0.0
    %363 = vmatpush1.msra.mxu0 0.0
    %364 = vmatprep.subr.mxu0 0.0
    %365 = vmatpush1.msra.mxu0 0.0
    %366 = vmatprep.subr.mxu0 0.0
    %367 = vmatpush1.msra.mxu0 0.0
    %368 = vmatprep.mubr.f32.mxu0 0.0
    %369 = vmatmul.mubr.f32.gmra.mrb[0].mxu0 %v286
    %v370 = vpop.f32.mrb[0].mxu0
    %v371 = vadd.f32 0.0, %v370
    %v372 = vpop.f32.mrb[0].mxu0
    %373 = vdwg.mxu0
    %374 = vmatprep.subr.mxu0 0.0
    %375 = vmatpush1.msra.mxu0 %v371
    %376 = vmatprep.subr.mxu0 0.0
    %377 = vmatpush1.msra.mxu0 0.0
    %378 = vmatprep.subr.mxu0 0.0
    %379 = vmatpush1.msra.mxu0 0.0
    %380 = vmatprep.subr.mxu0 0.0
    %381 = vmatpush1.msra.mxu0 0.0
    %382 = vmatprep.subr.mxu0 0.0
    %383 = vmatpush1.msra.mxu0 0.0
    %384 = vmatprep.subr.mxu0 0.0
    %385 = vmatpush1.msra.mxu0 0.0
    %386 = vmatprep.subr.mxu0 0.0
    %387 = vmatpush1.msra.mxu0 0.0
    %388 = vmatprep.subr.mxu0 0.0
    %389 = vmatpush1.msra.mxu0 0.0
    %390 = vmatprep.subr.mxu0 0.0
    %391 = vmatpush1.msra.mxu0 0.0
    %392 = vmatprep.subr.mxu0 0.0
    %393 = vmatpush1.msra.mxu0 0.0
    %394 = vmatprep.subr.mxu0 0.0
    %395 = vmatpush1.msra.mxu0 0.0
    %396 = vmatprep.subr.mxu0 0.0
    %397 = vmatpush1.msra.mxu0 0.0
    %398 = vmatprep.subr.mxu0 0.0
    %399 = vmatpush1.msra.mxu0 0.0
    %400 = vmatprep.subr.mxu0 0.0
    %401 = vmatpush1.msra.mxu0 0.0
    %402 = vmatprep.subr.mxu0 0.0
    %403 = vmatpush1.msra.mxu0 0.0
    %404 = vmatprep.subr.mxu0 0.0
    %405 = vmatpush1.msra.mxu0 0.0
    %406 = vmatprep.subr.mxu0 0.0
    %407 = vmatpush1.msra.mxu0 0.0
    %408 = vmatprep.subr.mxu0 0.0
    %409 = vmatpush1.msra.mxu0 0.0
    %410 = vmatprep.subr.mxu0 0.0
    %411 = vmatpush1.msra.mxu0 0.0
    %412 = vmatprep.subr.mxu0 0.0
    %413 = vmatpush1.msra.mxu0 0.0
    %414 = vmatprep.subr.mxu0 0.0
    %415 = vmatpush1.msra.mxu0 0.0
    %416 = vmatprep.subr.mxu0 0.0
    %417 = vmatpush1.msra.mxu0 0.0
    %418 = vmatprep.subr.mxu0 0.0
    %419 = vmatpush1.msra.mxu0 0.0
    %420 = vmatprep.subr.mxu0 0.0
    %421 = vmatpush1.msra.mxu0 0.0
    %422 = vmatprep.subr.mxu0 0.0
    %423 = vmatpush1.msra.mxu0 0.0
    %424 = vmatprep.subr.mxu0 0.0
    %425 = vmatpush1.msra.mxu0 0.0
    %426 = vmatprep.subr.mxu0 0.0
    %427 = vmatpush1.msra.mxu0 0.0
    %428 = vmatprep.subr.mxu0 0.0
    %429 = vmatpush1.msra.mxu0 0.0
    %430 = vmatprep.subr.mxu0 0.0
    %431 = vmatpush1.msra.mxu0 0.0
    %432 = vmatprep.subr.mxu0 0.0
    %433 = vmatpush1.msra.mxu0 0.0
    %434 = vmatprep.subr.mxu0 0.0
    %435 = vmatpush1.msra.mxu0 0.0
    %436 = vmatprep.subr.mxu0 0.0
    %437 = vmatpush1.msra.mxu0 0.0
    %438 = vmatprep.mubr.f32.mxu0 0.0
    %439 = vmatmul.mubr.f32.gmra.mrb[0].mxu0 %v123
    %v440 = vpop.f32.mrb[0].mxu0
    %v441 = vadd.f32 0.0, %v440
    %v442 = vpop.f32.mrb[0].mxu0
    %443 = vdwg.mxu0
    %v444 = vmul.f32 %v441, 0.125
    %v445 = vlaneseq
    %v446 = vshrl.u32 %v445, 7
    %v447 = vsub.s32 0, %v446
    %v448 = vrot.slane %v444, %v447
    %v449 = vsub.f32 %v371, %v448
    %v450 = vmul.f32 %v449, %v449
    %451 = vmatprep.subr.mxu0 0.0
    %452 = vmatpush1.msra.mxu0 %v450
    %453 = vmatprep.subr.mxu0 0.0
    %454 = vmatpush1.msra.mxu0 0.0
    %455 = vmatprep.subr.mxu0 0.0
    %456 = vmatpush1.msra.mxu0 0.0
    %457 = vmatprep.subr.mxu0 0.0
    %458 = vmatpush1.msra.mxu0 0.0
    %459 = vmatprep.subr.mxu0 0.0
    %460 = vmatpush1.msra.mxu0 0.0
    %461 = vmatprep.subr.mxu0 0.0
    %462 = vmatpush1.msra.mxu0 0.0
    %463 = vmatprep.subr.mxu0 0.0
    %464 = vmatpush1.msra.mxu0 0.0
    %465 = vmatprep.subr.mxu0 0.0
    %466 = vmatpush1.msra.mxu0 0.0
    %467 = vmatprep.subr.mxu0 0.0
    %468 = vmatpush1.msra.mxu0 0.0
    %469 = vmatprep.subr.mxu0 0.0
    %470 = vmatpush1.msra.mxu0 0.0
    %471 = vmatprep.subr.mxu0 0.0
    %472 = vmatpush1.msra.mxu0 0.0
    %473 = vmatprep.subr.mxu0 0.0
    %474 = vmatpush1.msra.mxu0 0.0
    %475 = vmatprep.subr.mxu0 0.0
    %476 = vmatpush1.msra.mxu0 0.0
    %477 = vmatprep.subr.mxu0 0.0
    %478 = vmatpush1.msra.mxu0 0.0
    %479 = vmatprep.subr.mxu0 0.0
    %480 = vmatpush1.msra.mxu0 0.0
    %481 = vmatprep.subr.mxu0 0.0
    %482 = vmatpush1.msra.mxu0 0.0
    %483 = vmatprep.subr.mxu0 0.0
    %484 = vmatpush1.msra.mxu0 0.0
    %485 = vmatprep.subr.mxu0 0.0
    %486 = vmatpush1.msra.mxu0 0.0
    %487 = vmatprep.subr.mxu0 0.0
    %488 = vmatpush1.msra.mxu0 0.0
    %489 = vmatprep.subr.mxu0 0.0
    %490 = vmatpush1.msra.mxu0 0.0
    %491 = vmatprep.subr.mxu0 0.0
    %492 = vmatpush1.msra.mxu0 0.0
    %493 = vmatprep.subr.mxu0 0.0
    %494 = vmatpush1.msra.mxu0 0.0
    %495 = vmatprep.subr.mxu0 0.0
    %496 = vmatpush1.msra.mxu0 0.0
    %497 = vmatprep.subr.mxu0 0.0
    %498 = vmatpush1.msra.mxu0 0.0
    %499 = vmatprep.subr.mxu0 0.0
    %500 = vmatpush1.msra.mxu0 0.0
    %501 = vmatprep.subr.mxu0 0.0
    %502 = vmatpush1.msra.mxu0 0.0
    %503 = vmatprep.subr.mxu0 0.0
    %504 = vmatpush1.msra.mxu0 0.0
    %505 = vmatprep.subr.mxu0 0.0
    %506 = vmatpush1.msra.mxu0 0.0
    %507 = vmatprep.subr.mxu0 0.0
    %508 = vmatpush1.msra.mxu0 0.0
    %509 = vmatprep.subr.mxu0 0.0
    %510 = vmatpush1.msra.mxu0 0.0
    %511 = vmatprep.subr.mxu0 0.0
    %512 = vmatpush1.msra.mxu0 0.0
    %513 = vmatprep.subr.mxu0 0.0
    %514 = vmatpush1.msra.mxu0 0.0
    %515 = vmatprep.mubr.f32.mxu0 0.0
    %516 = vmatmul.mubr.f32.gmra.mrb[0].mxu0 %v123
    %v517 = vpop.f32.mrb[0].mxu0
    %v518 = vadd.f32 0.0, %v517
    %v519 = vpop.f32.mrb[0].mxu0
    %520 = vdwg.mxu0
    %v521 = vmul.f32 %v518, 0.125
    %v522 = vadd.f32 %v521, 1e-05
    %v523 = vrsqrt.pop %v522
    %v525 = vrot.slane %v523, 6
    %v527 = vmul.f32 %v42, %v525
    %v528 = vlaneseq
    %v529 = vshrl.u32 %v528, 7
    %v530 = vsub.s32 2, %v529
    %v531 = vrot.slane %v527, %v530
    %v532 = vmul.f32 %v449, %v531
    %v533 = vlaneseq
    %v534 = vshrl.u32 %v533, 7
    %v535 = vsub.s32 3, %v534
    %v536 = vrot.slane %v42, %v535
    %v537 = vadd.f32 %v532, %v536
    %v538 = vmax.f32 %v537, 0.0
    %539 = vst.msk [vmem:[#allocation7] sm:$0xff] %vm47, %v538
    // Predicated region
    $region22: #{tpu_custom_call.1} parent=1 // pred_check
      _
    $region23: #{tpu_custom_call.1} parent=1 // pred_check_branch
      %541 = sbr.rel (0) target = $region25
    $region24: #{tpu_custom_call.1} parent=1 // pred_region
      %s543 = ssub.s32 128, 128
      %544 = vsyncadd [#allocation4], %s543
      %s546 = sshll.u32 [#allocation7], 4
      %s547 = int_to_ptr.vmem [resolvable:$true] %s546
      %549 = dma.vmem_to_hbm [thread:$0]  %s547, 128, %s3, [#allocation4]
    $region25: #{tpu_custom_call.1} parent=1 // pred_fallthru
      _
    // Predicated region
    $region26: #{tpu_custom_call.1} parent=1 // pred_check
      _
    $region27: #{tpu_custom_call.1} parent=1 // pred_check_branch
      %551 = sbr.rel (0) target = $region29
    $region28: #{tpu_custom_call.1} parent=1 // pred_region
      %552 = dma.done [#allocation4], 128
    $region29: #{tpu_custom_call.1} parent=1 // pred_fallthru
      _
    %553 = vsyncpa [#allocation3], 1
    %554 = vsyncpa [#allocation6], 1
    %555 = vsyncpa [#allocation4], 1

</llo_original>
